<compile_context>
chip_gen: v7x
topology: tpu7x:2x2x1
jax: 0.10.0
libtpu: 0.0.40
codegen_flags: <defaults>
</compile_context>

<pallas_src>
import math
from functools import partial

import jax
import jax.numpy as jnp
from jax.experimental import pallas as pl
from jax.experimental.pallas import tpu as pltpu

BN_EPS = 1e-5
EMBED_DIM = 32      # RLModel.embed_dim
N_HIDDEN = 256      # MLPModel default n_hidden
VALUE_DIM = 1       # RLModel.value_model_dim
OUT_PAD = 128       # lane-dense padded output width shared by both heads
NUM_HEADS = 2       # head 0 = policy, head 1 = value


# ----------------------------------------------------------------------------- kernel
def _two_head_mlp_kernel(x_ref,
                         w1_ref, b1_ref, w2_ref, b2_ref,
                         w3_ref, b3_ref, w4_ref, b4_ref,
                         out_ref):
    """One MLP head per grid step: 3x (Linear[BN folded] -> ReLU) -> Linear (128-lane padded).

    Weights are bf16 (MXU-native); dots accumulate in f32; bias/ReLU stay f32.
    """
    h = x_ref[...].astype(jnp.bfloat16)
    h = jnp.maximum(
        jnp.dot(h, w1_ref[...], preferred_element_type=jnp.float32) + b1_ref[...], 0.0)
    h = jnp.maximum(
        jnp.dot(h.astype(jnp.bfloat16), w2_ref[...],
                preferred_element_type=jnp.float32) + b2_ref[...], 0.0)
    h = jnp.maximum(
        jnp.dot(h.astype(jnp.bfloat16), w3_ref[...],
                preferred_element_type=jnp.float32) + b3_ref[...], 0.0)
    out_ref[...] = (
        jnp.dot(h.astype(jnp.bfloat16), w4_ref[...],
                preferred_element_type=jnp.float32) + b4_ref[...]
    ).astype(out_ref.dtype)


def fused_heads_pallas(x, fused_params):
    """Single pallas_call running BOTH heads; grid=(2,) one head per step, 'parallel'.

    On v7x the two heads land on the two TensorCores; on v5e/v6e the two steps run
    back-to-back inside one launch (1 dispatch, 1 x DMA instead of 2).
    """
    n, n_in = x.shape

    def head_spec(a):
        # leading head axis squeezed out; full trailing extents (weights stay VMEM-resident)
        return pl.BlockSpec((None,) + a.shape[1:], lambda h: (h, 0, 0))

    return pl.pallas_call(
        _two_head_mlp_kernel,
        out_shape=jax.ShapeDtypeStruct((NUM_HEADS, n, OUT_PAD), jnp.float32),
        grid=(NUM_HEADS,),
        in_specs=[pl.BlockSpec((n, n_in), lambda h: (0, 0))]
                 + [head_spec(a) for a in fused_params],
        out_specs=pl.BlockSpec((None, n, OUT_PAD), lambda h: (h, 0, 0)),
        compiler_params=pltpu.CompilerParams(dimension_semantics=("parallel",)),
    )(x, *fused_params)
    # TODO(synk): if B*T grows beyond a few hundred rows, additionally tile the N axis
    # (grid=(NUM_HEADS, cdiv(N, TM)), x/out blocks (TM, n_in)/(TM, OUT_PAD), weights with a
    # constant index_map) to restore DMA/compute pipelining.


# ----------------------------------------------------------------------------- params
def _init_linear(key, fan_in, fan_out):
    kw, kb = jax.random.split(key)
    lim = 1.0 / math.sqrt(fan_in)
    w = jax.random.uniform(kw, (fan_in, fan_out), jnp.float32, -lim, lim)
    b = jax.random.uniform(kb, (1, fan_out), jnp.float32, -lim, lim)
    return w, b


def _init_bn(key, n):
    # deterministic (seeded) non-trivial eval-mode BatchNorm statistics,
    # expressed as y = x * scale + shift
    kg, kb, km, kv = jax.random.split(key, 4)
    gamma = 1.0 + 0.1 * jax.random.normal(kg, (1, n), jnp.float32)
    beta = 0.1 * jax.random.normal(kb, (1, n), jnp.float32)
    r_mean = 0.1 * jax.random.normal(km, (1, n), jnp.float32)
    r_var = jnp.abs(1.0 + 0.1 * jax.random.normal(kv, (1, n), jnp.float32))
    scale = gamma / jnp.sqrt(r_var + BN_EPS)
    shift = beta - r_mean * scale
    return scale, shift


def _init_mlp(key, n_in, n_out, n_hidden=N_HIDDEN):
    ks = jax.random.split(key, 7)
    w1, b1 = _init_linear(ks[0], n_in, n_hidden)
    s1, t1 = _init_bn(ks[1], n_hidden)
    w2, b2 = _init_linear(ks[2], n_hidden, n_hidden)
    s2, t2 = _init_bn(ks[3], n_hidden)
    w3, b3 = _init_linear(ks[4], n_hidden, n_hidden)
    s3, t3 = _init_bn(ks[5], n_hidden)
    w4, b4 = _init_linear(ks[6], n_hidden, n_out)
    return (w1, b1, s1, t1, w2, b2, s2, t2, w3, b3, s3, t3, w4, b4)


def init_rl_model_params(key, observation_shape, n_observation_buffer, num_actions):
    obs_size = math.prod(observation_shape) * n_observation_buffer
    n_in = obs_size + EMBED_DIM
    k_done, k_act, k_pol, k_val = jax.random.split(key, 4)
    return {
        # nn.Embedding(1, embed_dim)
        "is_done_emb": jax.random.normal(k_done, (1, EMBED_DIM), jnp.float32),
        # nn.Embedding((num_actions + 1) * n_observation_buffer, embed_dim)
        "action_emb": jax.random.normal(
            k_act, ((num_actions + 1) * n_observation_buffer, EMBED_DIM), jnp.float32),
        "policy": _init_mlp(k_pol, n_in, num_actions),
        "value": _init_mlp(k_val, n_in, VALUE_DIM),
    }


def fold_and_stack_heads(policy_params, value_params, num_actions):
    """Fold eval-BN affine into the preceding Linear, pad the final layer to OUT_PAD
    lanes (zero columns), stack both heads on a leading axis, cast weights to bf16."""
    def fold(p, n_out):
        (w1, b1, s1, t1, w2, b2, s2, t2, w3, b3, s3, t3, w4, b4) = p
        fw1, fb1 = w1 * s1, b1 * s1 + t1
        fw2, fb2 = w2 * s2, b2 * s2 + t2
        fw3, fb3 = w3 * s3, b3 * s3 + t3
        pad = OUT_PAD - n_out
        fw4 = jnp.pad(w4, ((0, 0), (0, pad)))
        fb4 = jnp.pad(b4, ((0, 0), (0, pad)))
        return (fw1, fb1, fw2, fb2, fw3, fb3, fw4, fb4)

    pol = fold(policy_params, num_actions)
    val = fold(value_params, VALUE_DIM)
    stacked = []
    for idx, (a, b) in enumerate(zip(pol, val)):
        s = jnp.stack([a, b], axis=0)
        if idx % 2 == 0:                 # weights -> bf16 (MXU-native); biases stay f32
            s = s.astype(jnp.bfloat16)
        stacked.append(s)
    return tuple(stacked)


def prepare_rl_model_params(raw_params, num_actions):
    """One-time param prep: BN fold + output padding + head stacking + bf16 cast."""
    return {
        "is_done_emb": raw_params["is_done_emb"],
        "action_emb": raw_params["action_emb"],
        "heads": fold_and_stack_heads(
            raw_params["policy"], raw_params["value"], num_actions),
    }


# ----------------------------------------------------------------------------- forward
def rl_model_forward(prepared, obs_array, step_counts, last_extended_actions,
                     *, num_actions, n_observation_buffer):
    """Mirror of RLModel.forward (eval mode). Returns (logits, values, final_states)."""
    B, T = step_counts.shape

    # --- context_embedding ---------------------------------------------- (JAX glue)
    done = (step_counts == 0).astype(jnp.float32)                       # (B, T)
    context = prepared["is_done_emb"][0] * done[..., None]              # (B, T, 32)
    lea = last_extended_actions.reshape(B, T, n_observation_buffer).astype(jnp.int32)
    n_ext = num_actions + 1
    for i in range(n_observation_buffer):
        context = context + prepared["action_emb"][lea[:, :, i] + i * n_ext]

    # --- prepare_tensors: view(B,T,-1) + concat -------------------------------
    # TODO(synk): MyRandomMask is identity in eval mode; training-mode stochastic
    # masking (host-side np.random gating) is intentionally not implemented here.
    obs = obs_array.reshape(B, T, -1).astype(jnp.float32)
    x = jnp.concatenate([obs, context], axis=-1).reshape(B * T, -1)     # (B*T, n_in)

    # --- fused policy+value heads: ONE pallas_call, lane-dense outputs --------
    out = fused_heads_pallas(x, prepared["heads"])                      # (2, B*T, 128)
    logits = out[0, :, :num_actions].reshape(B, T, num_actions)
    values = out[1, :, :VALUE_DIM].reshape(B, T, VALUE_DIM)

    final_states = {"policy": (None,), "value": (None,)}
    return logits, values, final_states


# pure-JAX references (for correctness checking only)
def _fused_head_ref(x, fused, head):
    """Same math as the kernel (folded params, bf16 weights, f32 accumulation)."""
    w1, b1, w2, b2, w3, b3, w4, b4 = (a[head] for a in fused)
    h = x.astype(jnp.bfloat16)
    h = jnp.maximum(jnp.dot(h, w1, preferred_element_type=jnp.float32) + b1, 0.0)
    h = jnp.maximum(jnp.dot(h.astype(jnp.bfloat16), w2,
                            preferred_element_type=jnp.float32) + b2, 0.0)
    h = jnp.maximum(jnp.dot(h.astype(jnp.bfloat16), w3,
                            preferred_element_type=jnp.float32) + b3, 0.0)
    return jnp.dot(h.astype(jnp.bfloat16), w4,
                   preferred_element_type=jnp.float32) + b4


def _mlp_ref_f32(x, p):
    """Original unfolded f32 head (sanity only; bf16 weights give ~1e-2 level diffs)."""
    (w1, b1, s1, t1, w2, b2, s2, t2, w3, b3, s3, t3, w4, b4) = p
    h = jnp.maximum((x @ w1 + b1) * s1 + t1, 0.0)
    h = jnp.maximum((h @ w2 + b2) * s2 + t2, 0.0)
    h = jnp.maximum((h @ w3 + b3) * s3 + t3, 0.0)
    return h @ w4 + b4


# ----------------------------------------------------------------------------- main
if __name__ == "__main__":
    # Small, RLModel-consistent shapes
    B, T = 2, 8
    observation_shape = (4, 4)        # prod = 16
    n_observation_buffer = 2          # obs_size = 32
    num_actions = 6

    key = jax.random.PRNGKey(0)
    k_params, k_obs, k_step, k_act = jax.random.split(key, 4)

    raw_params = init_rl_model_params(k_params, observation_shape,
                                      n_observation_buffer, num_actions)
    prepared = prepare_rl_model_params(raw_params, num_actions)

    obs_size = math.prod(observation_shape) * n_observation_buffer
    obs_array = jax.random.normal(k_obs, (B, T, obs_size), jnp.float32)
    step_counts = jax.random.randint(k_step, (B, T), 0, 5)              # zeros -> done
    last_ext_actions = jax.random.randint(
        k_act, (B, T, n_observation_buffer), 0, num_actions + 1)

    fwd = jax.jit(partial(rl_model_forward,
                          num_actions=num_actions,
                          n_observation_buffer=n_observation_buffer))
    logits, values, final_states = fwd(prepared, obs_array, step_counts, last_ext_actions)
    jax.block_until_ready((logits, values))

    assert logits.shape == (B, T, num_actions)
    assert values.shape == (B, T, VALUE_DIM)

    # cross-check the fused Pallas kernel against a matched pure-JAX reference
    done = (step_counts == 0).astype(jnp.float32)
    ctx = raw_params["is_done_emb"][0] * done[..., None]
    for i in range(n_observation_buffer):
        ctx = ctx + raw_params["action_emb"][
            last_ext_actions[:, :, i] + i * (num_actions + 1)]
    x_ref = jnp.concatenate([obs_array, ctx], -1).reshape(B * T, -1)

    ref_logits = _fused_head_ref(x_ref, prepared["heads"], 0)[:, :num_actions]
    ref_values = _fused_head_ref(x_ref, prepared["heads"], 1)[:, :VALUE_DIM]
    assert jnp.allclose(logits.reshape(B * T, -1), ref_logits, atol=1e-2, rtol=1e-2)
    assert jnp.allclose(values.reshape(B * T, -1), ref_values, atol=1e-2, rtol=1e-2)

    # sanity (not asserted): distance from the original unfolded f32 model is bf16-level
    _ = float(jnp.max(jnp.abs(
        _mlp_ref_f32(x_ref, raw_params["policy"]) - logits.reshape(B * T, -1))))

    print("KERNEL_OK")
</pallas_src>

<mosaic_0001>
module attributes {stable_mosaic.version = 11 : i64} {
  func.func @_two_head_mlp_kernel(%arg0: i32, %arg1: memref<16x64xf32, #tpu.memory_space<vmem>>, %arg2: memref<1x64x256xbf16, #tpu.memory_space<vmem>>, %arg3: memref<1x1x256xf32, #tpu.memory_space<vmem>>, %arg4: memref<1x256x256xbf16, #tpu.memory_space<vmem>>, %arg5: memref<1x1x256xf32, #tpu.memory_space<vmem>>, %arg6: memref<1x256x256xbf16, #tpu.memory_space<vmem>>, %arg7: memref<1x1x256xf32, #tpu.memory_space<vmem>>, %arg8: memref<1x256x128xbf16, #tpu.memory_space<vmem>>, %arg9: memref<1x1x128xf32, #tpu.memory_space<vmem>>, %arg10: memref<1x16x128xf32, #tpu.memory_space<vmem>>) attributes {dimension_semantics = [#tpu.dimension_semantics<parallel>], iteration_bounds = array<i64: 2>, scalar_prefetch = 0 : i64, scratch_operands = 0 : i64, tpu.core_type = #tpu.core_type<tc>, window_params = [{pipeline_mode = #tpu.pipeline_mode<synchronous>, transform_indices = @transform_0, window_bounds = array<i64: 16, 64>}, {transform_indices = @transform_1, window_bounds = array<i64: 1, 64, 256>}, {transform_indices = @transform_2, window_bounds = array<i64: 1, 1, 256>}, {transform_indices = @transform_3, window_bounds = array<i64: 1, 256, 256>}, {transform_indices = @transform_4, window_bounds = array<i64: 1, 1, 256>}, {transform_indices = @transform_5, window_bounds = array<i64: 1, 256, 256>}, {transform_indices = @transform_6, window_bounds = array<i64: 1, 1, 256>}, {transform_indices = @transform_7, window_bounds = array<i64: 1, 256, 128>}, {transform_indices = @transform_8, window_bounds = array<i64: 1, 1, 128>}, {transform_indices = @transform_9, window_bounds = array<i64: 1, 16, 128>}]} {
    %c0 = arith.constant 0 : index
    %c0_0 = arith.constant 0 : index
    %0 = vector.load %arg1[%c0, %c0_0] : memref<16x64xf32, #tpu.memory_space<vmem>>, vector<16x64xf32>
    %1 = arith.truncf %0 : vector<16x64xf32> to vector<16x64xbf16>
    %c0_1 = arith.constant 0 : index
    %c0_2 = arith.constant 0 : index
    %c0_3 = arith.constant 0 : index
    %2 = vector.load %arg2[%c0_1, %c0_2, %c0_3] : memref<1x64x256xbf16, #tpu.memory_space<vmem>>, vector<1x64x256xbf16>
    %3 = vector.shape_cast %2 : vector<1x64x256xbf16> to vector<64x256xbf16>
    %cst = arith.constant dense<0.000000e+00> : vector<16x256xf32>
    %4 = tpu.matmul %1, %3, %cst {dimension_numbers = #tpu.dot_dimension_numbers<[1], [0], [0], [1], [0, 0, 1, 1], [], []>} : vector<16x64xbf16>, vector<64x256xbf16>, vector<16x256xf32> -> vector<16x256xf32>
    %c0_4 = arith.constant 0 : index
    %c0_5 = arith.constant 0 : index
    %c0_6 = arith.constant 0 : index
    %5 = vector.load %arg3[%c0_4, %c0_5, %c0_6] : memref<1x1x256xf32, #tpu.memory_space<vmem>>, vector<1x1x256xf32>
    %6 = vector.shape_cast %5 : vector<1x1x256xf32> to vector<1x256xf32>
    %7 = vector.broadcast %6 : vector<1x256xf32> to vector<16x256xf32>
    %8 = arith.addf %4, %7 : vector<16x256xf32>
    %cst_7 = arith.constant 0.000000e+00 : f32
    %9 = vector.broadcast %cst_7 : f32 to vector<16x256xf32>
    %10 = arith.maximumf %8, %9 : vector<16x256xf32>
    %11 = arith.truncf %10 : vector<16x256xf32> to vector<16x256xbf16>
    %c0_8 = arith.constant 0 : index
    %c0_9 = arith.constant 0 : index
    %c0_10 = arith.constant 0 : index
    %12 = vector.load %arg4[%c0_8, %c0_9, %c0_10] : memref<1x256x256xbf16, #tpu.memory_space<vmem>>, vector<1x256x256xbf16>
    %13 = vector.shape_cast %12 : vector<1x256x256xbf16> to vector<256x256xbf16>
    %cst_11 = arith.constant dense<0.000000e+00> : vector<16x256xf32>
    %14 = tpu.matmul %11, %13, %cst_11 {dimension_numbers = #tpu.dot_dimension_numbers<[1], [0], [0], [1], [0, 0, 1, 1], [], []>} : vector<16x256xbf16>, vector<256x256xbf16>, vector<16x256xf32> -> vector<16x256xf32>
    %c0_12 = arith.constant 0 : index
    %c0_13 = arith.constant 0 : index
    %c0_14 = arith.constant 0 : index
    %15 = vector.load %arg5[%c0_12, %c0_13, %c0_14] : memref<1x1x256xf32, #tpu.memory_space<vmem>>, vector<1x1x256xf32>
    %16 = vector.shape_cast %15 : vector<1x1x256xf32> to vector<1x256xf32>
    %17 = vector.broadcast %16 : vector<1x256xf32> to vector<16x256xf32>
    %18 = arith.addf %14, %17 : vector<16x256xf32>
    %cst_15 = arith.constant 0.000000e+00 : f32
    %19 = vector.broadcast %cst_15 : f32 to vector<16x256xf32>
    %20 = arith.maximumf %18, %19 : vector<16x256xf32>
    %21 = arith.truncf %20 : vector<16x256xf32> to vector<16x256xbf16>
    %c0_16 = arith.constant 0 : index
    %c0_17 = arith.constant 0 : index
    %c0_18 = arith.constant 0 : index
    %22 = vector.load %arg6[%c0_16, %c0_17, %c0_18] : memref<1x256x256xbf16, #tpu.memory_space<vmem>>, vector<1x256x256xbf16>
    %23 = vector.shape_cast %22 : vector<1x256x256xbf16> to vector<256x256xbf16>
    %cst_19 = arith.constant dense<0.000000e+00> : vector<16x256xf32>
    %24 = tpu.matmul %21, %23, %cst_19 {dimension_numbers = #tpu.dot_dimension_numbers<[1], [0], [0], [1], [0, 0, 1, 1], [], []>} : vector<16x256xbf16>, vector<256x256xbf16>, vector<16x256xf32> -> vector<16x256xf32>
    %c0_20 = arith.constant 0 : index
    %c0_21 = arith.constant 0 : index
    %c0_22 = arith.constant 0 : index
    %25 = vector.load %arg7[%c0_20, %c0_21, %c0_22] : memref<1x1x256xf32, #tpu.memory_space<vmem>>, vector<1x1x256xf32>
    %26 = vector.shape_cast %25 : vector<1x1x256xf32> to vector<1x256xf32>
    %27 = vector.broadcast %26 : vector<1x256xf32> to vector<16x256xf32>
    %28 = arith.addf %24, %27 : vector<16x256xf32>
    %cst_23 = arith.constant 0.000000e+00 : f32
    %29 = vector.broadcast %cst_23 : f32 to vector<16x256xf32>
    %30 = arith.maximumf %28, %29 : vector<16x256xf32>
    %31 = arith.truncf %30 : vector<16x256xf32> to vector<16x256xbf16>
    %c0_24 = arith.constant 0 : index
    %c0_25 = arith.constant 0 : index
    %c0_26 = arith.constant 0 : index
    %32 = vector.load %arg8[%c0_24, %c0_25, %c0_26] : memref<1x256x128xbf16, #tpu.memory_space<vmem>>, vector<1x256x128xbf16>
    %33 = vector.shape_cast %32 : vector<1x256x128xbf16> to vector<256x128xbf16>
    %cst_27 = arith.constant dense<0.000000e+00> : vector<16x128xf32>
    %34 = tpu.matmul %31, %33, %cst_27 {dimension_numbers = #tpu.dot_dimension_numbers<[1], [0], [0], [1], [0, 0, 1, 1], [], []>} : vector<16x256xbf16>, vector<256x128xbf16>, vector<16x128xf32> -> vector<16x128xf32>
    %c0_28 = arith.constant 0 : index
    %c0_29 = arith.constant 0 : index
    %c0_30 = arith.constant 0 : index
    %35 = vector.load %arg9[%c0_28, %c0_29, %c0_30] : memref<1x1x128xf32, #tpu.memory_space<vmem>>, vector<1x1x128xf32>
    %36 = vector.shape_cast %35 : vector<1x1x128xf32> to vector<1x128xf32>
    %37 = vector.broadcast %36 : vector<1x128xf32> to vector<16x128xf32>
    %38 = arith.addf %34, %37 : vector<16x128xf32>
    %c0_31 = arith.constant 0 : index
    %c0_32 = arith.constant 0 : index
    %c0_33 = arith.constant 0 : index
    %39 = vector.load %arg10[%c0_31, %c0_32, %c0_33] : memref<1x16x128xf32, #tpu.memory_space<vmem>>, vector<1x16x128xf32>
    %40 = vector.shape_cast %39 : vector<1x16x128xf32> to vector<16x128xf32>
    %41 = vector.shape_cast %38 : vector<16x128xf32> to vector<1x16x128xf32>
    tpu.vector_store %arg10[%c0_31, %c0_32, %c0_33], %41 {strides = array<i32>} : memref<1x16x128xf32, #tpu.memory_space<vmem>>, vector<1x16x128xf32>,
    return
  }
  func.func @transform_0(%arg0: i32) -> (i32, i32) {
    %c0_i32 = arith.constant 0 : i32
    %c0_i32_0 = arith.constant 0 : i32
    %c0_i32_1 = arith.constant 0 : i32
    return %c0_i32, %c0_i32_0 : i32, i32
  }
  func.func @transform_1(%arg0: i32) -> (i32, i32, i32) {
    %c0_i32 = arith.constant 0 : i32
    %c0_i32_0 = arith.constant 0 : i32
    %c0_i32_1 = arith.constant 0 : i32
    return %arg0, %c0_i32, %c0_i32_0 : i32, i32, i32
  }
  func.func @transform_2(%arg0: i32) -> (i32, i32, i32) {
    %c0_i32 = arith.constant 0 : i32
    %c0_i32_0 = arith.constant 0 : i32
    %c0_i32_1 = arith.constant 0 : i32
    return %arg0, %c0_i32, %c0_i32_0 : i32, i32, i32
  }
  func.func @transform_3(%arg0: i32) -> (i32, i32, i32) {
    %c0_i32 = arith.constant 0 : i32
    %c0_i32_0 = arith.constant 0 : i32
    %c0_i32_1 = arith.constant 0 : i32
    return %arg0, %c0_i32, %c0_i32_0 : i32, i32, i32
  }
  func.func @transform_4(%arg0: i32) -> (i32, i32, i32) {
    %c0_i32 = arith.constant 0 : i32
    %c0_i32_0 = arith.constant 0 : i32
    %c0_i32_1 = arith.constant 0 : i32
    return %arg0, %c0_i32, %c0_i32_0 : i32, i32, i32
  }
  func.func @transform_5(%arg0: i32) -> (i32, i32, i32) {
    %c0_i32 = arith.constant 0 : i32
    %c0_i32_0 = arith.constant 0 : i32
    %c0_i32_1 = arith.constant 0 : i32
    return %arg0, %c0_i32, %c0_i32_0 : i32, i32, i32
  }
  func.func @transform_6(%arg0: i32) -> (i32, i32, i32) {
    %c0_i32 = arith.constant 0 : i32
    %c0_i32_0 = arith.constant 0 : i32
    %c0_i32_1 = arith.constant 0 : i32
    return %arg0, %c0_i32, %c0_i32_0 : i32, i32, i32
  }
  func.func @transform_7(%arg0: i32) -> (i32, i32, i32) {
    %c0_i32 = arith.constant 0 : i32
    %c0_i32_0 = arith.constant 0 : i32
    %c0_i32_1 = arith.constant 0 : i32
    return %arg0, %c0_i32, %c0_i32_0 : i32, i32, i32
  }
  func.func @transform_8(%arg0: i32) -> (i32, i32, i32) {
    %c0_i32 = arith.constant 0 : i32
    %c0_i32_0 = arith.constant 0 : i32
    %c0_i32_1 = arith.constant 0 : i32
    return %arg0, %c0_i32, %c0_i32_0 : i32, i32, i32
  }
  func.func @transform_9(%arg0: i32) -> (i32, i32, i32) {
    %c0_i32 = arith.constant 0 : i32
    %c0_i32_0 = arith.constant 0 : i32
    %c0_i32_1 = arith.constant 0 : i32
    return %arg0, %c0_i32, %c0_i32_0 : i32, i32, i32
  }
}

</mosaic_0001>

<llo_original>
// kernel: squeeze.9
$region0: #{squeeze.9}
  %s0 = inlined_call_operand.vmem [shape: f32[16], index: 0, kind: input, shape index: {}]
  %s1 = inlined_call_operand.hbm [shape: f32[2,8,1], index: 1, kind: output, shape index: {}]
  $region1: #{squeeze.9} parent=0
    #allocation0 [shape = 'u8[1024]{0}', space=vmem, size = 0x400, scoped, tag = 'operand span for operand 1']
    #allocation1 [shape = 's32[1]{0}', space=sflag, size = 0x4, scoped, tag = 'scoped memory for squeeze.9']
    #allocation2 [shape = 'u8[4096]{0}', space=vmem, size = 0x1000, scoped, tag = 'scoped mem for output reshape']
    #allocation3 [shape = 'u8[4096]{0}', space=vmem, size = 0x1000, scoped, tag = 'scoped mem for input reshape']
    %2 = vsyncpa [#allocation1], 0
    %s4 = sshllo.u32 0, 1
    %v5 = vld [vmem:[%s0] sm:%s4]
    %6 = vst [vmem:[#allocation3] sm:%s4] %v5
    %v7 = vld [vmem:[#allocation3] sm:$0x1]
    %vm8 = vcmask 64512
    %9 = vst.msk [vmem:[#allocation2] sm:$0x1] %vm8, %v7
    %v10 = vld [vmem:[#allocation3] sm:$0x1]
    %11 = vrot.lane.b32.xlu0 %v10, 120
    %v12 = vpop.permute.xlu0 %11
    %vm13 = vcmask 64512
    %s14 = scalar_lea.vmem [#allocation2], 1
    %15 = vst.msk [vmem:[%s14] sm:$0x1] %vm13, %v12
    %s17 = sshllo.u32 0, 2
    %v19 = vld [vmem:[#allocation2] sm:%s17]
    %s20 = sshllo.u32 0, 2
    %21 = vst [vmem:[#allocation0] sm:%s20] %v19
    %s23 = ssub.s32 32, 32
    %24 = vsyncadd [#allocation1], %s23
    %s26 = sshll.u32 [#allocation0], 4
    %s27 = int_to_ptr.vmem [resolvable:$true] %s26
    %29 = dma.vmem_to_hbm [thread:$0]  %s27, 32, %s1, [#allocation1]
    %30 = dma.done [#allocation1], 32
    %31 = vsyncpa [#allocation1], 1

// kernel: rl_model_forward.1
$region0: #{rl_model_forward.1}
  #allocation0 [shape = 'u32[]', space=smem, size = 0x4, offset = 0x4, fixed_abs, tag = 'smem constant byte address 0x4 - core index']
  #allocation1 [shape = 'u32[144,128]{1,0:T(1,128)}', space=vmem, size = 0x12000, scoped, tag = 'internal scratch']
  %s0 = inlined_call_operand.vmem [shape: f32[16,64], index: 0, kind: input, shape index: {}]
  %s1 = inlined_call_operand.vmem [shape: bf16[2,64,256], index: 1, kind: input, shape index: {}]
  %s2 = inlined_call_operand.vmem [shape: f32[2,1,256], index: 2, kind: input, shape index: {}]
  %s3 = inlined_call_operand.hbm [shape: bf16[2,256,256], index: 3, kind: input, shape index: {}]
  %s4 = inlined_call_operand.vmem [shape: f32[2,1,256], index: 4, kind: input, shape index: {}]
  %s5 = inlined_call_operand.hbm [shape: bf16[2,256,256], index: 5, kind: input, shape index: {}]
  %s6 = inlined_call_operand.vmem [shape: f32[2,1,256], index: 6, kind: input, shape index: {}]
  %s7 = inlined_call_operand.vmem [shape: bf16[2,256,128], index: 7, kind: input, shape index: {}]
  %s8 = inlined_call_operand.vmem [shape: f32[2,1,128], index: 8, kind: input, shape index: {}]
  %s9 = inlined_call_operand.vmem [shape: f32[2,16,128], index: 9, kind: output, shape index: {}]
  %s10 = sld [smem:[#allocation0]]
  $region77: #{rl_model_forward.1} parent=0
    _
  %s12 = ssub.s32 1, %s10
  %s13 = scalar_select 0, %s12, %s10
  $region1: #{rl_model_forward.1} parent=0
    #allocation2 [shape = 'u8[262144]{0}', space=vmem, size = 0x40000, scoped, tag = 'input window, operand 3']
    #allocation3 [shape = 's32[2]{0}', space=sflag, size = 0x8, scoped, tag = 'scoped memory for rl_model_forward.1']
    #allocation4 [shape = 'u8[262144]{0}', space=vmem, size = 0x40000, scoped, tag = 'input window, operand 5']
    #allocation5 [shape = 's32[2]{0}', space=sflag, size = 0x8, scoped, tag = 'scoped memory for rl_model_forward.1']
    %14 = vsyncpa [#allocation3], 0
    %s15 = scalar_lea.sflag [#allocation3], 1
    %16 = vsyncpa %s15, 0
    %17 = vsyncpa [#allocation5], 0
    %s18 = scalar_lea.sflag [#allocation5], 1
    %19 = vsyncpa %s18, 0
    loop: start=0, step=1, limit=4
    $region2: #{rl_model_forward.1} parent=1 // loop_pre_header
      _
    $region3: #{rl_model_forward.1} parent=1 // loop_header
      %s21 = sphi 0, %s25
      %p22 = scmp.ge.s32.totalorder %s21, 4
      %s29 = sphi 0, %s29
      %s31 = sphi 0, %s29
      %s32 = sphi 0, %s31
      %s46 = sphi 0, %s32
      %s52 = sphi 0, %s54
      %s55 = sphi 0, %s52
      %s56 = sphi 0, %s55
      %s72 = sphi 0, %s56
      %s78 = sphi 0, %s80
      %s81 = sphi 0, %s78
      %s82 = sphi 0, %s81
      %s98 = sphi 0, %s82
      %s104 = sphi 0, %s106
      %s107 = sphi 0, %s104
      %s108 = sphi 0, %s107
      %s124 = sphi 0, %s108
      %s130 = sphi 0, %s132
      %s133 = sphi 0, %s130
      %s134 = sphi 0, %s133
      %s150 = sphi 0, %s134
      %s156 = sphi 0, %s158
      %s159 = sphi 0, %s156
      %s160 = sphi 0, %s159
      %s176 = sphi 0, %s160
      %s182 = sphi 0, %s184
      %s185 = sphi 0, %s182
      %s186 = sphi 0, %s185
      %s202 = sphi 0, %s186
      %s208 = sphi 0, %s210
      %s211 = sphi 0, %s208
      %s212 = sphi 0, %s211
      %s228 = sphi 0, %s212
      %s234 = sphi 0, %s236
      %s237 = sphi 0, %s234
      %s238 = sphi 0, %s237
      %s254 = sphi 0, %s238
      %s260 = sphi 0, %s262
      %s263 = sphi 0, %s260
      %s264 = sphi 0, %s263
      %s280 = sphi 0, %s264
    $region4: #{rl_model_forward.1} parent=1 // loop_header_branch
      %24 = sbr.rel (%p22) target = $region8
    $region5: #{rl_model_forward.1} parent=1 // loop_body
      %s26 = ssub.s32 %s21, 1
      %s27 = ssub.s32 %s21, 2
      %s28 = sadd.s32 %s21, 1
      %s30 = sadd.s32 %s29, 1
      %p33 = scmp.eq.s32.totalorder %s21, 1
      %p34 = scmp.ne.s32.totalorder %s29, %s31
      %p35 = scmp.eq.s32.totalorder %s21, 0
      %p36 = por %p34, %p35
      %p37 = scmp.ne.s32.totalorder %s29, %s31
      %p38 = scmp.eq.s32.totalorder %s26, 1
      %p39 = por %p37, %p38
      %p40 = scmp.ne.s32.totalorder %s31, %s32
      %p41 = scmp.eq.s32.totalorder %s26, 0
      %p42 = por %p40, %p41
      %p43 = scmp.ne.s32.totalorder %s31, %s32
      %p44 = scmp.eq.s32.totalorder %s27, 1
      %p45 = por %p43, %p44
      %p47 = scmp.ne.s32.totalorder %s32, %s46
      %p48 = scmp.eq.s32.totalorder %s27, 0
      %p49 = por %p47, %p48
      %s50 = ssub.s32 %s21, %s28
      %p51 = scmp.eq.s32.totalorder %s50, 0
      %s53 = sadd.s32 %s52, 1
      %s54 = scalar_select %p51, %s52, %s53
      %p57 = pneg %p51
      %p58 = scmp.eq.s32.totalorder %s21, 1
      %p59 = por %p57, %p58
      %p60 = scmp.ne.s32.totalorder %s52, %s55
      %p61 = scmp.eq.s32.totalorder %s21, 0
      %p62 = por %p60, %p61
      %p63 = scmp.ne.s32.totalorder %s52, %s55
      %p64 = scmp.eq.s32.totalorder %s26, 1
      %p65 = por %p63, %p64
      %p66 = scmp.ne.s32.totalorder %s55, %s56
      %p67 = scmp.eq.s32.totalorder %s26, 0
      %p68 = por %p66, %p67
      %p69 = scmp.ne.s32.totalorder %s55, %s56
      %p70 = scmp.eq.s32.totalorder %s27, 1
      %p71 = por %p69, %p70
      %p73 = scmp.ne.s32.totalorder %s56, %s72
      %p74 = scmp.eq.s32.totalorder %s27, 0
      %p75 = por %p73, %p74
      %s76 = ssub.s32 %s21, %s28
      %p77 = scmp.eq.s32.totalorder %s76, 0
      %s79 = sadd.s32 %s78, 1
      %s80 = scalar_select %p77, %s78, %s79
      %p83 = pneg %p77
      %p84 = scmp.eq.s32.totalorder %s21, 1
      %p85 = por %p83, %p84
      %p86 = scmp.ne.s32.totalorder %s78, %s81
      %p87 = scmp.eq.s32.totalorder %s21, 0
      %p88 = por %p86, %p87
      %p89 = scmp.ne.s32.totalorder %s78, %s81
      %p90 = scmp.eq.s32.totalorder %s26, 1
      %p91 = por %p89, %p90
      %p92 = scmp.ne.s32.totalorder %s81, %s82
      %p93 = scmp.eq.s32.totalorder %s26, 0
      %p94 = por %p92, %p93
      %p95 = scmp.ne.s32.totalorder %s81, %s82
      %p96 = scmp.eq.s32.totalorder %s27, 1
      %p97 = por %p95, %p96
      %p99 = scmp.ne.s32.totalorder %s82, %s98
      %p100 = scmp.eq.s32.totalorder %s27, 0
      %p101 = por %p99, %p100
      %s102 = ssub.s32 %s21, %s28
      %p103 = scmp.eq.s32.totalorder %s102, 0
      %s105 = sadd.s32 %s104, 1
      %s106 = scalar_select %p103, %s104, %s105
      %p109 = pneg %p103
      %p110 = scmp.eq.s32.totalorder %s21, 1
      %p111 = por %p109, %p110
      %p112 = scmp.ne.s32.totalorder %s104, %s107
      %p113 = scmp.eq.s32.totalorder %s21, 0
      %p114 = por %p112, %p113
      %p115 = scmp.ne.s32.totalorder %s104, %s107
      %p116 = scmp.eq.s32.totalorder %s26, 1
      %p117 = por %p115, %p116
      %p118 = scmp.ne.s32.totalorder %s107, %s108
      %p119 = scmp.eq.s32.totalorder %s26, 0
      %p120 = por %p118, %p119
      %p121 = scmp.ne.s32.totalorder %s107, %s108
      %p122 = scmp.eq.s32.totalorder %s27, 1
      %p123 = por %p121, %p122
      %p125 = scmp.ne.s32.totalorder %s108, %s124
      %p126 = scmp.eq.s32.totalorder %s27, 0
      %p127 = por %p125, %p126
      %s128 = ssub.s32 %s21, %s28
      %p129 = scmp.eq.s32.totalorder %s128, 0
      %s131 = sadd.s32 %s130, 1
      %s132 = scalar_select %p129, %s130, %s131
      %p135 = pneg %p129
      %p136 = scmp.eq.s32.totalorder %s21, 1
      %p137 = por %p135, %p136
      %p138 = scmp.ne.s32.totalorder %s130, %s133
      %p139 = scmp.eq.s32.totalorder %s21, 0
      %p140 = por %p138, %p139
      %p141 = scmp.ne.s32.totalorder %s130, %s133
      %p142 = scmp.eq.s32.totalorder %s26, 1
      %p143 = por %p141, %p142
      %p144 = scmp.ne.s32.totalorder %s133, %s134
      %p145 = scmp.eq.s32.totalorder %s26, 0
      %p146 = por %p144, %p145
      %p147 = scmp.ne.s32.totalorder %s133, %s134
      %p148 = scmp.eq.s32.totalorder %s27, 1
      %p149 = por %p147, %p148
      %p151 = scmp.ne.s32.totalorder %s134, %s150
      %p152 = scmp.eq.s32.totalorder %s27, 0
      %p153 = por %p151, %p152
      %s154 = ssub.s32 %s21, %s28
      %p155 = scmp.eq.s32.totalorder %s154, 0
      %s157 = sadd.s32 %s156, 1
      %s158 = scalar_select %p155, %s156, %s157
      %p161 = pneg %p155
      %p162 = scmp.eq.s32.totalorder %s21, 1
      %p163 = por %p161, %p162
      %p164 = scmp.ne.s32.totalorder %s156, %s159
      %p165 = scmp.eq.s32.totalorder %s21, 0
      %p166 = por %p164, %p165
      %p167 = scmp.ne.s32.totalorder %s156, %s159
      %p168 = scmp.eq.s32.totalorder %s26, 1
      %p169 = por %p167, %p168
      %p170 = scmp.ne.s32.totalorder %s159, %s160
      %p171 = scmp.eq.s32.totalorder %s26, 0
      %p172 = por %p170, %p171
      %p173 = scmp.ne.s32.totalorder %s159, %s160
      %p174 = scmp.eq.s32.totalorder %s27, 1
      %p175 = por %p173, %p174
      %p177 = scmp.ne.s32.totalorder %s160, %s176
      %p178 = scmp.eq.s32.totalorder %s27, 0
      %p179 = por %p177, %p178
      %s180 = ssub.s32 %s21, %s28
      %p181 = scmp.eq.s32.totalorder %s180, 0
      %s183 = sadd.s32 %s182, 1
      %s184 = scalar_select %p181, %s182, %s183
      %p187 = pneg %p181
      %p188 = scmp.eq.s32.totalorder %s21, 1
      %p189 = por %p187, %p188
      %p190 = scmp.ne.s32.totalorder %s182, %s185
      %p191 = scmp.eq.s32.totalorder %s21, 0
      %p192 = por %p190, %p191
      %p193 = scmp.ne.s32.totalorder %s182, %s185
      %p194 = scmp.eq.s32.totalorder %s26, 1
      %p195 = por %p193, %p194
      %p196 = scmp.ne.s32.totalorder %s185, %s186
      %p197 = scmp.eq.s32.totalorder %s26, 0
      %p198 = por %p196, %p197
      %p199 = scmp.ne.s32.totalorder %s185, %s186
      %p200 = scmp.eq.s32.totalorder %s27, 1
      %p201 = por %p199, %p200
      %p203 = scmp.ne.s32.totalorder %s186, %s202
      %p204 = scmp.eq.s32.totalorder %s27, 0
      %p205 = por %p203, %p204
      %s206 = ssub.s32 %s21, %s28
      %p207 = scmp.eq.s32.totalorder %s206, 0
      %s209 = sadd.s32 %s208, 1
      %s210 = scalar_select %p207, %s208, %s209
      %p213 = pneg %p207
      %p214 = scmp.eq.s32.totalorder %s21, 1
      %p215 = por %p213, %p214
      %p216 = scmp.ne.s32.totalorder %s208, %s211
      %p217 = scmp.eq.s32.totalorder %s21, 0
      %p218 = por %p216, %p217
      %p219 = scmp.ne.s32.totalorder %s208, %s211
      %p220 = scmp.eq.s32.totalorder %s26, 1
      %p221 = por %p219, %p220
      %p222 = scmp.ne.s32.totalorder %s211, %s212
      %p223 = scmp.eq.s32.totalorder %s26, 0
      %p224 = por %p222, %p223
      %p225 = scmp.ne.s32.totalorder %s211, %s212
      %p226 = scmp.eq.s32.totalorder %s27, 1
      %p227 = por %p225, %p226
      %p229 = scmp.ne.s32.totalorder %s212, %s228
      %p230 = scmp.eq.s32.totalorder %s27, 0
      %p231 = por %p229, %p230
      %s232 = ssub.s32 %s21, %s28
      %p233 = scmp.eq.s32.totalorder %s232, 0
      %s235 = sadd.s32 %s234, 1
      %s236 = scalar_select %p233, %s234, %s235
      %p239 = pneg %p233
      %p240 = scmp.eq.s32.totalorder %s21, 1
      %p241 = por %p239, %p240
      %p242 = scmp.ne.s32.totalorder %s234, %s237
      %p243 = scmp.eq.s32.totalorder %s21, 0
      %p244 = por %p242, %p243
      %p245 = scmp.ne.s32.totalorder %s234, %s237
      %p246 = scmp.eq.s32.totalorder %s26, 1
      %p247 = por %p245, %p246
      %p248 = scmp.ne.s32.totalorder %s237, %s238
      %p249 = scmp.eq.s32.totalorder %s26, 0
      %p250 = por %p248, %p249
      %p251 = scmp.ne.s32.totalorder %s237, %s238
      %p252 = scmp.eq.s32.totalorder %s27, 1
      %p253 = por %p251, %p252
      %p255 = scmp.ne.s32.totalorder %s238, %s254
      %p256 = scmp.eq.s32.totalorder %s27, 0
      %p257 = por %p255, %p256
      %s258 = ssub.s32 %s21, %s28
      %p259 = scmp.eq.s32.totalorder %s258, 0
      %s261 = sadd.s32 %s260, 1
      %s262 = scalar_select %p259, %s260, %s261
      %p265 = pneg %p259
      %p266 = scmp.eq.s32.totalorder %s21, 1
      %p267 = por %p265, %p266
      %p268 = scmp.ne.s32.totalorder %s260, %s263
      %p269 = scmp.eq.s32.totalorder %s21, 0
      %p270 = por %p268, %p269
      %p271 = scmp.ne.s32.totalorder %s260, %s263
      %p272 = scmp.eq.s32.totalorder %s26, 1
      %p273 = por %p271, %p272
      %p274 = scmp.ne.s32.totalorder %s263, %s264
      %p275 = scmp.eq.s32.totalorder %s26, 0
      %p276 = por %p274, %p275
      %p277 = scmp.ne.s32.totalorder %s263, %s264
      %p278 = scmp.eq.s32.totalorder %s27, 1
      %p279 = por %p277, %p278
      %p281 = scmp.ne.s32.totalorder %s264, %s280
      %p282 = scmp.eq.s32.totalorder %s27, 0
      %p283 = por %p281, %p282
      %p284 = scmp.le.s32.totalorder 1, %s21
      %p285 = scmp.lt.s32.totalorder %s21, 3
      %p286 = pnand %p284, %p285
      %p287 = pneg %p286
      // Predicated region
      $region9: #{rl_model_forward.1} parent=5 // pred_check
        _
      $region10: #{rl_model_forward.1} parent=5 // pred_check_branch
        %289 = sbr.rel (%p286) target = $region12
      $region11: #{rl_model_forward.1} parent=5 // pred_region
        %s290 = ssub.s32 %s21, 1
        // Predicated region
        $region13: #{rl_model_forward.1} parent=11 // pred_check
          %p291 = pneg %p42
        $region14: #{rl_model_forward.1} parent=11 // pred_check_branch
          %293 = sbr.rel (%p291) target = $region16
        $region15: #{rl_model_forward.1} parent=11 // pred_region
          _
        $region16: #{rl_model_forward.1} parent=11 // pred_fallthru
          _
      $region12: #{rl_model_forward.1} parent=5 // pred_fallthru
        _
      %p294 = scmp.lt.s32.totalorder %s21, 2
      // Predicated region
      $region17: #{rl_model_forward.1} parent=5 // pred_check
        %p295 = pneg %p294
      $region18: #{rl_model_forward.1} parent=5 // pred_check_branch
        %297 = sbr.rel (%p295) target = $region20
      $region19: #{rl_model_forward.1} parent=5 // pred_region
        // Predicated region
        $region21: #{rl_model_forward.1} parent=19 // pred_check
          %p298 = pneg %p62
        $region22: #{rl_model_forward.1} parent=19 // pred_check_branch
          %300 = sbr.rel (%p298) target = $region24
        $region23: #{rl_model_forward.1} parent=19 // pred_region
          %p301 = scmp.lt.s32.totalorder %s21, 1
          %s302 = scalar_select %p301, %s21, 1
          %s303 = smul.addr %s302, 16
          %s304 = smul.addr %s303, 4
          %s305 = scalar_lea.vmem %s1, %s304
        $region24: #{rl_model_forward.1} parent=19 // pred_fallthru
          _
        // Predicated region
        $region25: #{rl_model_forward.1} parent=19 // pred_check
          %p306 = pneg %p88
        $region26: #{rl_model_forward.1} parent=19 // pred_check_branch
          %308 = sbr.rel (%p306) target = $region28
        $region27: #{rl_model_forward.1} parent=19 // pred_region
          %p309 = scmp.lt.s32.totalorder %s21, 1
          %s310 = scalar_select %p309, %s21, 1
          %s311 = smul.addr %s310, 2
          %s312 = scalar_lea.vmem %s2, %s311
        $region28: #{rl_model_forward.1} parent=19 // pred_fallthru
          _
        // Predicated region
        $region29: #{rl_model_forward.1} parent=19 // pred_check
          %p313 = pneg %p114
        $region30: #{rl_model_forward.1} parent=19 // pred_check_branch
          %315 = sbr.rel (%p313) target = $region32
        $region31: #{rl_model_forward.1} parent=19 // pred_region
          %s316 = sand.u32 %s104, 1
          %s317 = scalar_lea.sflag [#allocation3], %s316
          %s318 = sand.u32 %s104, 1
          %s319 = smul.addr %s318, 256
          %s320 = scalar_lea.vmem [#allocation2], %s319
          %s322 = ssub.s32 4096, 4096
          %323 = vsyncadd %s317, %s322
          %s324 = smul.addr %s21, 64
          %s325 = smul.addr %s324, 64
          %s326 = scalar_lea.hbm %s3, %s325
          %s327 = sshll.u32 %s320, 4
          %s328 = int_to_ptr.vmem [resolvable:$true] %s327
          %333 = dma.hbm_to_vmem [thread:$0]  %s326, 4096, %s328, %s317, 128, 128, 8
        $region32: #{rl_model_forward.1} parent=19 // pred_fallthru
          _
        // Predicated region
        $region33: #{rl_model_forward.1} parent=19 // pred_check
          %p334 = pneg %p140
        $region34: #{rl_model_forward.1} parent=19 // pred_check_branch
          %336 = sbr.rel (%p334) target = $region36
        $region35: #{rl_model_forward.1} parent=19 // pred_region
          %p337 = scmp.lt.s32.totalorder %s21, 1
          %s338 = scalar_select %p337, %s21, 1
          %s339 = smul.addr %s338, 2
          %s340 = scalar_lea.vmem %s4, %s339
        $region36: #{rl_model_forward.1} parent=19 // pred_fallthru
          _
        // Predicated region
        $region37: #{rl_model_forward.1} parent=19 // pred_check
          %p341 = pneg %p166
        $region38: #{rl_model_forward.1} parent=19 // pred_check_branch
          %343 = sbr.rel (%p341) target = $region40
        $region39: #{rl_model_forward.1} parent=19 // pred_region
          %s344 = sand.u32 %s156, 1
          %s345 = scalar_lea.sflag [#allocation5], %s344
          %s346 = sand.u32 %s156, 1
          %s347 = smul.addr %s346, 256
          %s348 = scalar_lea.vmem [#allocation4], %s347
          %s350 = ssub.s32 4096, 4096
          %351 = vsyncadd %s345, %s350
          %s352 = smul.addr %s21, 64
          %s353 = smul.addr %s352, 64
          %s354 = scalar_lea.hbm %s5, %s353
          %s355 = sshll.u32 %s348, 4
          %s356 = int_to_ptr.vmem [resolvable:$true] %s355
          %361 = dma.hbm_to_vmem [thread:$0]  %s354, 4096, %s356, %s345, 128, 128, 8
        $region40: #{rl_model_forward.1} parent=19 // pred_fallthru
          _
        // Predicated region
        $region41: #{rl_model_forward.1} parent=19 // pred_check
          %p362 = pneg %p192
        $region42: #{rl_model_forward.1} parent=19 // pred_check_branch
          %364 = sbr.rel (%p362) target = $region44
        $region43: #{rl_model_forward.1} parent=19 // pred_region
          %p365 = scmp.lt.s32.totalorder %s21, 1
          %s366 = scalar_select %p365, %s21, 1
          %s367 = smul.addr %s366, 2
          %s368 = scalar_lea.vmem %s6, %s367
        $region44: #{rl_model_forward.1} parent=19 // pred_fallthru
          _
        // Predicated region
        $region45: #{rl_model_forward.1} parent=19 // pred_check
          %p369 = pneg %p218
        $region46: #{rl_model_forward.1} parent=19 // pred_check_branch
          %371 = sbr.rel (%p369) target = $region48
        $region47: #{rl_model_forward.1} parent=19 // pred_region
          %p372 = scmp.lt.s32.totalorder %s21, 1
          %s373 = scalar_select %p372, %s21, 1
          %s374 = smul.addr %s373, 32
          %s375 = smul.addr %s374, 4
          %s376 = scalar_lea.vmem %s7, %s375
        $region48: #{rl_model_forward.1} parent=19 // pred_fallthru
          _
        // Predicated region
        $region49: #{rl_model_forward.1} parent=19 // pred_check
          %p377 = pneg %p244
        $region50: #{rl_model_forward.1} parent=19 // pred_check_branch
          %379 = sbr.rel (%p377) target = $region52
        $region51: #{rl_model_forward.1} parent=19 // pred_region
          %p380 = scmp.lt.s32.totalorder %s21, 1
          %s381 = scalar_select %p380, %s21, 1
          %s382 = scalar_lea.vmem %s8, %s381
        $region52: #{rl_model_forward.1} parent=19 // pred_fallthru
          _
      $region20: #{rl_model_forward.1} parent=5 // pred_fallthru
        _
      %p383 = scmp.le.s32.totalorder 1, %s21
      %p384 = scmp.lt.s32.totalorder %s21, 3
      %p385 = pnand %p383, %p384
      %p386 = pneg %p385
      // Predicated region
      $region53: #{rl_model_forward.1} parent=5 // pred_check
        _
      $region54: #{rl_model_forward.1} parent=5 // pred_check_branch
        %388 = sbr.rel (%p385) target = $region56
      $region55: #{rl_model_forward.1} parent=5 // pred_region
        %s389 = ssub.s32 %s21, 1
        %s390 = sand.u32 %s107, 1
        %s391 = scalar_lea.sflag [#allocation3], %s390
        %s392 = sand.u32 %s107, 1
        %s393 = smul.addr %s392, 256
        %s394 = scalar_lea.vmem [#allocation2], %s393
        // Predicated region
        $region57: #{rl_model_forward.1} parent=55 // pred_check
          %p395 = pneg %p120
        $region58: #{rl_model_forward.1} parent=55 // pred_check_branch
          %397 = sbr.rel (%p395) target = $region60
        $region59: #{rl_model_forward.1} parent=55 // pred_region
          %398 = dma.done %s391, 4096
        $region60: #{rl_model_forward.1} parent=55 // pred_fallthru
          _
        %s399 = sand.u32 %s159, 1
        %s400 = scalar_lea.sflag [#allocation5], %s399
        %s401 = sand.u32 %s159, 1
        %s402 = smul.addr %s401, 256
        %s403 = scalar_lea.vmem [#allocation4], %s402
        // Predicated region
        $region61: #{rl_model_forward.1} parent=55 // pred_check
          %p404 = pneg %p172
        $region62: #{rl_model_forward.1} parent=55 // pred_check_branch
          %406 = sbr.rel (%p404) target = $region64
        $region63: #{rl_model_forward.1} parent=55 // pred_region
          %407 = dma.done %s400, 4096
        $region64: #{rl_model_forward.1} parent=55 // pred_fallthru
          _
        %p408 = pneg %p42
        %p409 = pneg %p39
        %p410 = scmp.lt.s32.totalorder %s26, 1
        %s411 = scalar_select %p410, %s26, 1
        %s412 = smul.addr %s411, 16
        %s413 = smul.addr %s412, 4
        %s414 = scalar_lea.vmem %s1, %s413
        %p415 = pneg %p68
        %p416 = pneg %p65
        %p417 = scmp.lt.s32.totalorder %s26, 1
        %s418 = scalar_select %p417, %s26, 1
        %s419 = smul.addr %s418, 2
        %s420 = scalar_lea.vmem %s2, %s419
        %p421 = pneg %p94
        %p422 = pneg %p91
        %s423 = sand.u32 %s107, 1
        %s424 = scalar_lea.sflag [#allocation3], %s423
        %s425 = sand.u32 %s107, 1
        %s426 = smul.addr %s425, 256
        %s427 = scalar_lea.vmem [#allocation2], %s426
        %p428 = pneg %p120
        %p429 = pneg %p117
        %p430 = scmp.lt.s32.totalorder %s26, 1
        %s431 = scalar_select %p430, %s26, 1
        %s432 = smul.addr %s431, 2
        %s433 = scalar_lea.vmem %s4, %s432
        %p434 = pneg %p146
        %p435 = pneg %p143
        %s436 = sand.u32 %s159, 1
        %s437 = scalar_lea.sflag [#allocation5], %s436
        %s438 = sand.u32 %s159, 1
        %s439 = smul.addr %s438, 256
        %s440 = scalar_lea.vmem [#allocation4], %s439
        %p441 = pneg %p172
        %p442 = pneg %p169
        %p443 = scmp.lt.s32.totalorder %s26, 1
        %s444 = scalar_select %p443, %s26, 1
        %s445 = smul.addr %s444, 2
        %s446 = scalar_lea.vmem %s6, %s445
        %p447 = pneg %p198
        %p448 = pneg %p195
        %p449 = scmp.lt.s32.totalorder %s26, 1
        %s450 = scalar_select %p449, %s26, 1
        %s451 = smul.addr %s450, 32
        %s452 = smul.addr %s451, 4
        %s453 = scalar_lea.vmem %s7, %s452
        %p454 = pneg %p224
        %p455 = pneg %p221
        %p456 = scmp.lt.s32.totalorder %s26, 1
        %s457 = scalar_select %p456, %s26, 1
        %s458 = scalar_lea.vmem %s8, %s457
        %p459 = pneg %p250
        %p460 = pneg %p247
        %p461 = pneg %p276
        %p462 = pneg %p273
        %p463 = scmp.lt.s32.totalorder %s26, 1
        %s464 = scalar_select %p463, %s26, 1
        %s465 = smul.addr %s464, 2
        %s466 = smul.addr %s465, 8
        %s467 = scalar_lea.vmem %s9, %s466
        %p468 = scmp.lt.s32.totalorder %s26, 1
        %s469 = scalar_select %p468, %s26, 1
        %s470 = smul.addr %s469, 16
        %s471 = smul.addr %s470, 4
        %s472 = scalar_lea.vmem %s1, %s471
        %p473 = scmp.lt.s32.totalorder %s26, 1
        %s474 = scalar_select %p473, %s26, 1
        %s475 = smul.addr %s474, 2
        %s476 = scalar_lea.vmem %s2, %s475
        %p477 = scmp.lt.s32.totalorder %s26, 1
        %s478 = scalar_select %p477, %s26, 1
        %s479 = smul.addr %s478, 2
        %s480 = scalar_lea.vmem %s4, %s479
        %p481 = scmp.lt.s32.totalorder %s26, 1
        %s482 = scalar_select %p481, %s26, 1
        %s483 = smul.addr %s482, 2
        %s484 = scalar_lea.vmem %s6, %s483
        %p485 = scmp.lt.s32.totalorder %s26, 1
        %s486 = scalar_select %p485, %s26, 1
        %s487 = smul.addr %s486, 32
        %s488 = smul.addr %s487, 4
        %s489 = scalar_lea.vmem %s7, %s488
        %p490 = scmp.lt.s32.totalorder %s26, 1
        %s491 = scalar_select %p490, %s26, 1
        %s492 = scalar_lea.vmem %s8, %s491
        %p493 = scmp.lt.s32.totalorder %s26, 1
        %s494 = scalar_select %p493, %s26, 1
        %s495 = smul.addr %s494, 2
        %s496 = smul.addr %s495, 8
        %s497 = scalar_lea.vmem %s9, %s496
        %v499 = vld [vmem:[%s0] sm:$0xff]
        %v500 = vld [vmem:[%s0 + $0x8] sm:$0xff]
        %v501 = vpack.c.bf16 %v500, %v499
        %v502 = vld [vmem:[%s472] sm:$0xff]
        %v503 = vld [vmem:[%s472 + $0x8] sm:$0xff]
        %v504 = vld [vmem:[%s472 + $0x10] sm:$0xff]
        %v505 = vld [vmem:[%s472 + $0x18] sm:$0xff]
        %v506 = vld [vmem:[%s472 + $0x20] sm:$0xff]
        %v507 = vld [vmem:[%s472 + $0x28] sm:$0xff]
        %v508 = vld [vmem:[%s472 + $0x30] sm:$0xff]
        %v509 = vld [vmem:[%s472 + $0x38] sm:$0xff]
        %v510 = vld [vmem:[%s476] sm:$0x3]
        %v512 = vlaneseq
        %v513 = vshrl.u32 %v512, 7
        %v514 = vsub.s32 0, %v513
        %v515 = vrot.slane %v510, %v514
        %v516 = vlaneseq
        %v517 = vshrl.u32 %v516, 7
        %v518 = vsub.s32 1, %v517
        %v519 = vrot.slane %v510, %v518
        %v530 = vunpack.c.l.b16 %v502
        %v531 = vunpack.c.h.b16 %v502
        %v532 = vunpack.c.l.b16 %v503
        %v533 = vunpack.c.h.b16 %v503
        %v534 = vunpack.c.l.b16 %v504
        %v535 = vunpack.c.h.b16 %v504
        %v536 = vunpack.c.l.b16 %v505
        %v537 = vunpack.c.h.b16 %v505
        %v538 = vunpack.c.l.b16 %v506
        %v539 = vunpack.c.h.b16 %v506
        %v540 = vunpack.c.l.b16 %v507
        %v541 = vunpack.c.h.b16 %v507
        %v542 = vunpack.c.l.b16 %v508
        %v543 = vunpack.c.h.b16 %v508
        %v544 = vunpack.c.l.b16 %v509
        %v545 = vunpack.c.h.b16 %v509
        %v546 = vpack.c.b16 %v532, %v530
        %v547 = vpack.c.b16 %v533, %v531
        %v548 = vpack.c.b16 %v536, %v534
        %v549 = vpack.c.b16 %v537, %v535
        %v550 = vpack.c.b16 %v540, %v538
        %v551 = vpack.c.b16 %v541, %v539
        %v552 = vpack.c.b16 %v544, %v542
        %v553 = vpack.c.b16 %v545, %v543
        %vm562 = vcmask 523264
        %v564 = vsel %vm562, %v501, 0
        %566 = vmatprep.subr.bf16.mxu0 %v547
        %567 = vmatpush1.bf16.msra.mxu0 %v546
        %568 = vmatprep.subr.bf16.mxu0 %v549
        %569 = vmatpush1.bf16.msra.mxu0 %v548
        %570 = vmatprep.subr.bf16.mxu0 %v551
        %571 = vmatpush1.bf16.msra.mxu0 %v550
        %572 = vmatprep.subr.bf16.mxu0 %v553
        %573 = vmatpush1.bf16.msra.mxu0 %v552
        %574 = vmatprep.subr.bf16.mxu0 0
        %575 = vmatpush1.bf16.msra.mxu0 0
        %576 = vmatprep.subr.bf16.mxu0 0
        %577 = vmatpush1.bf16.msra.mxu0 0
        %578 = vmatprep.subr.bf16.mxu0 0
        %579 = vmatpush1.bf16.msra.mxu0 0
        %580 = vmatprep.subr.bf16.mxu0 0
        %581 = vmatpush1.bf16.msra.mxu0 0
        %582 = vmatprep.subr.bf16.mxu0 0
        %583 = vmatpush1.bf16.msra.mxu0 0
        %584 = vmatprep.subr.bf16.mxu0 0
        %585 = vmatpush1.bf16.msra.mxu0 0
        %586 = vmatprep.subr.bf16.mxu0 0
        %587 = vmatpush1.bf16.msra.mxu0 0
        %588 = vmatprep.subr.bf16.mxu0 0
        %589 = vmatpush1.bf16.msra.mxu0 0
        %590 = vmatprep.subr.bf16.mxu0 0
        %591 = vmatpush1.bf16.msra.mxu0 0
        %592 = vmatprep.subr.bf16.mxu0 0
        %593 = vmatpush1.bf16.msra.mxu0 0
        %594 = vmatprep.subr.bf16.mxu0 0
        %595 = vmatpush1.bf16.msra.mxu0 0
        %596 = vmatprep.subr.bf16.mxu0 0
        %597 = vmatpush1.bf16.msra.mxu0 0
        %598 = vmatprep.mubr.bf16.mxu0 0
        %599 = vmatmul.mubr.bf16.gmra.mrb[0].mxu0 %v564
        %v600 = vpop.f32.mrb[0].mxu0
        %v601 = vadd.f32 %v515, %v600
        %v602 = vpop.f32.mrb[0].mxu0
        %v603 = vadd.f32 %v519, %v602
        %v604 = vpop.f32.mrb[0].mxu0
        %v605 = vadd.f32 %v515, %v604
        %v606 = vpop.f32.mrb[0].mxu0
        %v607 = vadd.f32 %v519, %v606
        %608 = vdwg.mxu0
        %v609 = vmax.f32 %v601, 0.0
        %v610 = vmax.f32 %v603, 0.0
        %v611 = vmax.f32 %v605, 0.0
        %v612 = vmax.f32 %v607, 0.0
        %v613 = vpack.c.bf16 %v611, %v609
        %v614 = vpack.c.bf16 %v612, %v610
        %v615 = vld [vmem:[%s394] sm:$0xff]
        %v616 = vld [vmem:[%s394 + $0x8] sm:$0xff]
        %v617 = vld [vmem:[%s394 + $0x10] sm:$0xff]
        %v618 = vld [vmem:[%s394 + $0x18] sm:$0xff]
        %v619 = vld [vmem:[%s394 + $0x20] sm:$0xff]
        %v620 = vld [vmem:[%s394 + $0x28] sm:$0xff]
        %v621 = vld [vmem:[%s394 + $0x30] sm:$0xff]
        %v622 = vld [vmem:[%s394 + $0x38] sm:$0xff]
        %v623 = vld [vmem:[%s394 + $0x40] sm:$0xff]
        %v624 = vld [vmem:[%s394 + $0x48] sm:$0xff]
        %v625 = vld [vmem:[%s394 + $0x50] sm:$0xff]
        %v626 = vld [vmem:[%s394 + $0x58] sm:$0xff]
        %v627 = vld [vmem:[%s394 + $0x60] sm:$0xff]
        %v628 = vld [vmem:[%s394 + $0x68] sm:$0xff]
        %v629 = vld [vmem:[%s394 + $0x70] sm:$0xff]
        %v630 = vld [vmem:[%s394 + $0x78] sm:$0xff]
        %v631 = vld [vmem:[%s394 + $0x80] sm:$0xff]
        %v632 = vld [vmem:[%s394 + $0x88] sm:$0xff]
        %v633 = vld [vmem:[%s394 + $0x90] sm:$0xff]
        %v634 = vld [vmem:[%s394 + $0x98] sm:$0xff]
        %v635 = vld [vmem:[%s394 + $0xa0] sm:$0xff]
        %v636 = vld [vmem:[%s394 + $0xa8] sm:$0xff]
        %v637 = vld [vmem:[%s394 + $0xb0] sm:$0xff]
        %v638 = vld [vmem:[%s394 + $0xb8] sm:$0xff]
        %v639 = vld [vmem:[%s394 + $0xc0] sm:$0xff]
        %v640 = vld [vmem:[%s394 + $0xc8] sm:$0xff]
        %v641 = vld [vmem:[%s394 + $0xd0] sm:$0xff]
        %v642 = vld [vmem:[%s394 + $0xd8] sm:$0xff]
        %v643 = vld [vmem:[%s394 + $0xe0] sm:$0xff]
        %v644 = vld [vmem:[%s394 + $0xe8] sm:$0xff]
        %v645 = vld [vmem:[%s394 + $0xf0] sm:$0xff]
        %v646 = vld [vmem:[%s394 + $0xf8] sm:$0xff]
        %v647 = vld [vmem:[%s480] sm:$0x3]
        %v649 = vlaneseq
        %v650 = vshrl.u32 %v649, 7
        %v651 = vsub.s32 0, %v650
        %v652 = vrot.slane %v647, %v651
        %v653 = vlaneseq
        %v654 = vshrl.u32 %v653, 7
        %v655 = vsub.s32 1, %v654
        %v656 = vrot.slane %v647, %v655
        %v691 = vunpack.c.l.b16 %v615
        %v692 = vunpack.c.h.b16 %v615
        %v693 = vunpack.c.l.b16 %v616
        %v694 = vunpack.c.h.b16 %v616
        %v695 = vunpack.c.l.b16 %v617
        %v696 = vunpack.c.h.b16 %v617
        %v697 = vunpack.c.l.b16 %v618
        %v698 = vunpack.c.h.b16 %v618
        %v699 = vunpack.c.l.b16 %v619
        %v700 = vunpack.c.h.b16 %v619
        %v701 = vunpack.c.l.b16 %v620
        %v702 = vunpack.c.h.b16 %v620
        %v703 = vunpack.c.l.b16 %v621
        %v704 = vunpack.c.h.b16 %v621
        %v705 = vunpack.c.l.b16 %v622
        %v706 = vunpack.c.h.b16 %v622
        %v707 = vunpack.c.l.b16 %v623
        %v708 = vunpack.c.h.b16 %v623
        %v709 = vunpack.c.l.b16 %v624
        %v710 = vunpack.c.h.b16 %v624
        %v711 = vunpack.c.l.b16 %v625
        %v712 = vunpack.c.h.b16 %v625
        %v713 = vunpack.c.l.b16 %v626
        %v714 = vunpack.c.h.b16 %v626
        %v715 = vunpack.c.l.b16 %v627
        %v716 = vunpack.c.h.b16 %v627
        %v717 = vunpack.c.l.b16 %v628
        %v718 = vunpack.c.h.b16 %v628
        %v719 = vunpack.c.l.b16 %v629
        %v720 = vunpack.c.h.b16 %v629
        %v721 = vunpack.c.l.b16 %v630
        %v722 = vunpack.c.h.b16 %v630
        %v723 = vunpack.c.l.b16 %v631
        %v724 = vunpack.c.h.b16 %v631
        %v725 = vunpack.c.l.b16 %v632
        %v726 = vunpack.c.h.b16 %v632
        %v727 = vunpack.c.l.b16 %v633
        %v728 = vunpack.c.h.b16 %v633
        %v729 = vunpack.c.l.b16 %v634
        %v730 = vunpack.c.h.b16 %v634
        %v731 = vunpack.c.l.b16 %v635
        %v732 = vunpack.c.h.b16 %v635
        %v733 = vunpack.c.l.b16 %v636
        %v734 = vunpack.c.h.b16 %v636
        %v735 = vunpack.c.l.b16 %v637
        %v736 = vunpack.c.h.b16 %v637
        %v737 = vunpack.c.l.b16 %v638
        %v738 = vunpack.c.h.b16 %v638
        %v739 = vunpack.c.l.b16 %v639
        %v740 = vunpack.c.h.b16 %v639
        %v741 = vunpack.c.l.b16 %v640
        %v742 = vunpack.c.h.b16 %v640
        %v743 = vunpack.c.l.b16 %v641
        %v744 = vunpack.c.h.b16 %v641
        %v745 = vunpack.c.l.b16 %v642
        %v746 = vunpack.c.h.b16 %v642
        %v747 = vunpack.c.l.b16 %v643
        %v748 = vunpack.c.h.b16 %v643
        %v749 = vunpack.c.l.b16 %v644
        %v750 = vunpack.c.h.b16 %v644
        %v751 = vunpack.c.l.b16 %v645
        %v752 = vunpack.c.h.b16 %v645
        %v753 = vunpack.c.l.b16 %v646
        %v754 = vunpack.c.h.b16 %v646
        %v755 = vpack.c.b16 %v693, %v691
        %v756 = vpack.c.b16 %v694, %v692
        %v757 = vpack.c.b16 %v697, %v695
        %v758 = vpack.c.b16 %v698, %v696
        %v759 = vpack.c.b16 %v701, %v699
        %v760 = vpack.c.b16 %v702, %v700
        %v761 = vpack.c.b16 %v705, %v703
        %v762 = vpack.c.b16 %v706, %v704
        %v763 = vpack.c.b16 %v709, %v707
        %v764 = vpack.c.b16 %v710, %v708
        %v765 = vpack.c.b16 %v713, %v711
        %v766 = vpack.c.b16 %v714, %v712
        %v767 = vpack.c.b16 %v717, %v715
        %v768 = vpack.c.b16 %v718, %v716
        %v769 = vpack.c.b16 %v721, %v719
        %v770 = vpack.c.b16 %v722, %v720
        %v771 = vpack.c.b16 %v725, %v723
        %v772 = vpack.c.b16 %v726, %v724
        %v773 = vpack.c.b16 %v729, %v727
        %v774 = vpack.c.b16 %v730, %v728
        %v775 = vpack.c.b16 %v733, %v731
        %v776 = vpack.c.b16 %v734, %v732
        %v777 = vpack.c.b16 %v737, %v735
        %v778 = vpack.c.b16 %v738, %v736
        %v779 = vpack.c.b16 %v741, %v739
        %v780 = vpack.c.b16 %v742, %v740
        %v781 = vpack.c.b16 %v745, %v743
        %v782 = vpack.c.b16 %v746, %v744
        %v783 = vpack.c.b16 %v749, %v747
        %v784 = vpack.c.b16 %v750, %v748
        %v785 = vpack.c.b16 %v753, %v751
        %v786 = vpack.c.b16 %v754, %v752
        %819 = vmatprep.subr.bf16.mxu0 %v756
        %820 = vmatpush1.bf16.msra.mxu0 %v755
        %821 = vmatprep.subr.bf16.mxu0 %v758
        %822 = vmatpush1.bf16.msra.mxu0 %v757
        %823 = vmatprep.subr.bf16.mxu0 %v760
        %824 = vmatpush1.bf16.msra.mxu0 %v759
        %825 = vmatprep.subr.bf16.mxu0 %v762
        %826 = vmatpush1.bf16.msra.mxu0 %v761
        %827 = vmatprep.subr.bf16.mxu0 %v764
        %828 = vmatpush1.bf16.msra.mxu0 %v763
        %829 = vmatprep.subr.bf16.mxu0 %v766
        %830 = vmatpush1.bf16.msra.mxu0 %v765
        %831 = vmatprep.subr.bf16.mxu0 %v768
        %832 = vmatpush1.bf16.msra.mxu0 %v767
        %833 = vmatprep.subr.bf16.mxu0 %v770
        %834 = vmatpush1.bf16.msra.mxu0 %v769
        %835 = vmatprep.subr.bf16.mxu0 %v772
        %836 = vmatpush1.bf16.msra.mxu0 %v771
        %837 = vmatprep.subr.bf16.mxu0 %v774
        %838 = vmatpush1.bf16.msra.mxu0 %v773
        %839 = vmatprep.subr.bf16.mxu0 %v776
        %840 = vmatpush1.bf16.msra.mxu0 %v775
        %841 = vmatprep.subr.bf16.mxu0 %v778
        %842 = vmatpush1.bf16.msra.mxu0 %v777
        %843 = vmatprep.subr.bf16.mxu0 %v780
        %844 = vmatpush1.bf16.msra.mxu0 %v779
        %845 = vmatprep.subr.bf16.mxu0 %v782
        %846 = vmatpush1.bf16.msra.mxu0 %v781
        %847 = vmatprep.subr.bf16.mxu0 %v784
        %848 = vmatpush1.bf16.msra.mxu0 %v783
        %849 = vmatprep.subr.bf16.mxu0 %v786
        %850 = vmatpush1.bf16.msra.mxu0 %v785
        %851 = vmatprep.mubr.bf16.mxu0 %v614
        %852 = vmatmul.mubr.bf16.gmra.mrb[0].mxu0 %v613
        %v853 = vpop.f32.mrb[0].mxu0
        %v854 = vadd.f32 %v652, %v853
        %v855 = vpop.f32.mrb[0].mxu0
        %v856 = vadd.f32 %v656, %v855
        %v857 = vpop.f32.mrb[0].mxu0
        %v858 = vadd.f32 %v652, %v857
        %v859 = vpop.f32.mrb[0].mxu0
        %v860 = vadd.f32 %v656, %v859
        %861 = vdwg.mxu0
        %v862 = vmax.f32 %v854, 0.0
        %v863 = vmax.f32 %v856, 0.0
        %v864 = vmax.f32 %v858, 0.0
        %v865 = vmax.f32 %v860, 0.0
        %v866 = vpack.c.bf16 %v864, %v862
        %v867 = vpack.c.bf16 %v865, %v863
        %v868 = vld [vmem:[%s403] sm:$0xff]
        %v869 = vld [vmem:[%s403 + $0x8] sm:$0xff]
        %v870 = vld [vmem:[%s403 + $0x10] sm:$0xff]
        %v871 = vld [vmem:[%s403 + $0x18] sm:$0xff]
        %v872 = vld [vmem:[%s403 + $0x20] sm:$0xff]
        %v873 = vld [vmem:[%s403 + $0x28] sm:$0xff]
        %v874 = vld [vmem:[%s403 + $0x30] sm:$0xff]
        %v875 = vld [vmem:[%s403 + $0x38] sm:$0xff]
        %v876 = vld [vmem:[%s403 + $0x40] sm:$0xff]
        %v877 = vld [vmem:[%s403 + $0x48] sm:$0xff]
        %v878 = vld [vmem:[%s403 + $0x50] sm:$0xff]
        %v879 = vld [vmem:[%s403 + $0x58] sm:$0xff]
        %v880 = vld [vmem:[%s403 + $0x60] sm:$0xff]
        %v881 = vld [vmem:[%s403 + $0x68] sm:$0xff]
        %v882 = vld [vmem:[%s403 + $0x70] sm:$0xff]
        %v883 = vld [vmem:[%s403 + $0x78] sm:$0xff]
        %v884 = vld [vmem:[%s403 + $0x80] sm:$0xff]
        %v885 = vld [vmem:[%s403 + $0x88] sm:$0xff]
        %v886 = vld [vmem:[%s403 + $0x90] sm:$0xff]
        %v887 = vld [vmem:[%s403 + $0x98] sm:$0xff]
        %v888 = vld [vmem:[%s403 + $0xa0] sm:$0xff]
        %v889 = vld [vmem:[%s403 + $0xa8] sm:$0xff]
        %v890 = vld [vmem:[%s403 + $0xb0] sm:$0xff]
        %v891 = vld [vmem:[%s403 + $0xb8] sm:$0xff]
        %v892 = vld [vmem:[%s403 + $0xc0] sm:$0xff]
        %v893 = vld [vmem:[%s403 + $0xc8] sm:$0xff]
        %v894 = vld [vmem:[%s403 + $0xd0] sm:$0xff]
        %v895 = vld [vmem:[%s403 + $0xd8] sm:$0xff]
        %v896 = vld [vmem:[%s403 + $0xe0] sm:$0xff]
        %v897 = vld [vmem:[%s403 + $0xe8] sm:$0xff]
        %v898 = vld [vmem:[%s403 + $0xf0] sm:$0xff]
        %v899 = vld [vmem:[%s403 + $0xf8] sm:$0xff]
        %v900 = vld [vmem:[%s484] sm:$0x3]
        %v902 = vlaneseq
        %v903 = vshrl.u32 %v902, 7
        %v904 = vsub.s32 0, %v903
        %v905 = vrot.slane %v900, %v904
        %v906 = vlaneseq
        %v907 = vshrl.u32 %v906, 7
        %v908 = vsub.s32 1, %v907
        %v909 = vrot.slane %v900, %v908
        %v944 = vunpack.c.l.b16 %v868
        %v945 = vunpack.c.h.b16 %v868
        %v946 = vunpack.c.l.b16 %v869
        %v947 = vunpack.c.h.b16 %v869
        %v948 = vunpack.c.l.b16 %v870
        %v949 = vunpack.c.h.b16 %v870
        %v950 = vunpack.c.l.b16 %v871
        %v951 = vunpack.c.h.b16 %v871
        %v952 = vunpack.c.l.b16 %v872
        %v953 = vunpack.c.h.b16 %v872
        %v954 = vunpack.c.l.b16 %v873
        %v955 = vunpack.c.h.b16 %v873
        %v956 = vunpack.c.l.b16 %v874
        %v957 = vunpack.c.h.b16 %v874
        %v958 = vunpack.c.l.b16 %v875
        %v959 = vunpack.c.h.b16 %v875
        %v960 = vunpack.c.l.b16 %v876
        %v961 = vunpack.c.h.b16 %v876
        %v962 = vunpack.c.l.b16 %v877
        %v963 = vunpack.c.h.b16 %v877
        %v964 = vunpack.c.l.b16 %v878
        %v965 = vunpack.c.h.b16 %v878
        %v966 = vunpack.c.l.b16 %v879
        %v967 = vunpack.c.h.b16 %v879
        %v968 = vunpack.c.l.b16 %v880
        %v969 = vunpack.c.h.b16 %v880
        %v970 = vunpack.c.l.b16 %v881
        %v971 = vunpack.c.h.b16 %v881
        %v972 = vunpack.c.l.b16 %v882
        %v973 = vunpack.c.h.b16 %v882
        %v974 = vunpack.c.l.b16 %v883
        %v975 = vunpack.c.h.b16 %v883
        %v976 = vunpack.c.l.b16 %v884
        %v977 = vunpack.c.h.b16 %v884
        %v978 = vunpack.c.l.b16 %v885
        %v979 = vunpack.c.h.b16 %v885
        %v980 = vunpack.c.l.b16 %v886
        %v981 = vunpack.c.h.b16 %v886
        %v982 = vunpack.c.l.b16 %v887
        %v983 = vunpack.c.h.b16 %v887
        %v984 = vunpack.c.l.b16 %v888
        %v985 = vunpack.c.h.b16 %v888
        %v986 = vunpack.c.l.b16 %v889
        %v987 = vunpack.c.h.b16 %v889
        %v988 = vunpack.c.l.b16 %v890
        %v989 = vunpack.c.h.b16 %v890
        %v990 = vunpack.c.l.b16 %v891
        %v991 = vunpack.c.h.b16 %v891
        %v992 = vunpack.c.l.b16 %v892
        %v993 = vunpack.c.h.b16 %v892
        %v994 = vunpack.c.l.b16 %v893
        %v995 = vunpack.c.h.b16 %v893
        %v996 = vunpack.c.l.b16 %v894
        %v997 = vunpack.c.h.b16 %v894
        %v998 = vunpack.c.l.b16 %v895
        %v999 = vunpack.c.h.b16 %v895
        %v1000 = vunpack.c.l.b16 %v896
        %v1001 = vunpack.c.h.b16 %v896
        %v1002 = vunpack.c.l.b16 %v897
        %v1003 = vunpack.c.h.b16 %v897
        %v1004 = vunpack.c.l.b16 %v898
        %v1005 = vunpack.c.h.b16 %v898
        %v1006 = vunpack.c.l.b16 %v899
        %v1007 = vunpack.c.h.b16 %v899
        %v1008 = vpack.c.b16 %v946, %v944
        %v1009 = vpack.c.b16 %v947, %v945
        %v1010 = vpack.c.b16 %v950, %v948
        %v1011 = vpack.c.b16 %v951, %v949
        %v1012 = vpack.c.b16 %v954, %v952
        %v1013 = vpack.c.b16 %v955, %v953
        %v1014 = vpack.c.b16 %v958, %v956
        %v1015 = vpack.c.b16 %v959, %v957
        %v1016 = vpack.c.b16 %v962, %v960
        %v1017 = vpack.c.b16 %v963, %v961
        %v1018 = vpack.c.b16 %v966, %v964
        %v1019 = vpack.c.b16 %v967, %v965
        %v1020 = vpack.c.b16 %v970, %v968
        %v1021 = vpack.c.b16 %v971, %v969
        %v1022 = vpack.c.b16 %v974, %v972
        %v1023 = vpack.c.b16 %v975, %v973
        %v1024 = vpack.c.b16 %v978, %v976
        %v1025 = vpack.c.b16 %v979, %v977
        %v1026 = vpack.c.b16 %v982, %v980
        %v1027 = vpack.c.b16 %v983, %v981
        %v1028 = vpack.c.b16 %v986, %v984
        %v1029 = vpack.c.b16 %v987, %v985
        %v1030 = vpack.c.b16 %v990, %v988
        %v1031 = vpack.c.b16 %v991, %v989
        %v1032 = vpack.c.b16 %v994, %v992
        %v1033 = vpack.c.b16 %v995, %v993
        %v1034 = vpack.c.b16 %v998, %v996
        %v1035 = vpack.c.b16 %v999, %v997
        %v1036 = vpack.c.b16 %v1002, %v1000
        %v1037 = vpack.c.b16 %v1003, %v1001
        %v1038 = vpack.c.b16 %v1006, %v1004
        %v1039 = vpack.c.b16 %v1007, %v1005
        %1072 = vmatprep.subr.bf16.mxu0 %v1009
        %1073 = vmatpush1.bf16.msra.mxu0 %v1008
        %1074 = vmatprep.subr.bf16.mxu0 %v1011
        %1075 = vmatpush1.bf16.msra.mxu0 %v1010
        %1076 = vmatprep.subr.bf16.mxu0 %v1013
        %1077 = vmatpush1.bf16.msra.mxu0 %v1012
        %1078 = vmatprep.subr.bf16.mxu0 %v1015
        %1079 = vmatpush1.bf16.msra.mxu0 %v1014
        %1080 = vmatprep.subr.bf16.mxu0 %v1017
        %1081 = vmatpush1.bf16.msra.mxu0 %v1016
        %1082 = vmatprep.subr.bf16.mxu0 %v1019
        %1083 = vmatpush1.bf16.msra.mxu0 %v1018
        %1084 = vmatprep.subr.bf16.mxu0 %v1021
        %1085 = vmatpush1.bf16.msra.mxu0 %v1020
        %1086 = vmatprep.subr.bf16.mxu0 %v1023
        %1087 = vmatpush1.bf16.msra.mxu0 %v1022
        %1088 = vmatprep.subr.bf16.mxu0 %v1025
        %1089 = vmatpush1.bf16.msra.mxu0 %v1024
        %1090 = vmatprep.subr.bf16.mxu0 %v1027
        %1091 = vmatpush1.bf16.msra.mxu0 %v1026
        %1092 = vmatprep.subr.bf16.mxu0 %v1029
        %1093 = vmatpush1.bf16.msra.mxu0 %v1028
        %1094 = vmatprep.subr.bf16.mxu0 %v1031
        %1095 = vmatpush1.bf16.msra.mxu0 %v1030
        %1096 = vmatprep.subr.bf16.mxu0 %v1033
        %1097 = vmatpush1.bf16.msra.mxu0 %v1032
        %1098 = vmatprep.subr.bf16.mxu0 %v1035
        %1099 = vmatpush1.bf16.msra.mxu0 %v1034
        %1100 = vmatprep.subr.bf16.mxu0 %v1037
        %1101 = vmatpush1.bf16.msra.mxu0 %v1036
        %1102 = vmatprep.subr.bf16.mxu0 %v1039
        %1103 = vmatpush1.bf16.msra.mxu0 %v1038
        %1104 = vmatprep.mubr.bf16.mxu0 %v867
        %1105 = vmatmul.mubr.bf16.gmra.mrb[0].mxu0 %v866
        %v1106 = vpop.f32.mrb[0].mxu0
        %v1107 = vadd.f32 %v905, %v1106
        %v1108 = vpop.f32.mrb[0].mxu0
        %v1109 = vadd.f32 %v909, %v1108
        %v1110 = vpop.f32.mrb[0].mxu0
        %v1111 = vadd.f32 %v905, %v1110
        %v1112 = vpop.f32.mrb[0].mxu0
        %v1113 = vadd.f32 %v909, %v1112
        %1114 = vdwg.mxu0
        %v1115 = vmax.f32 %v1107, 0.0
        %v1116 = vmax.f32 %v1109, 0.0
        %v1117 = vmax.f32 %v1111, 0.0
        %v1118 = vmax.f32 %v1113, 0.0
        %v1119 = vpack.c.bf16 %v1117, %v1115
        %v1120 = vpack.c.bf16 %v1118, %v1116
        %v1121 = vld [vmem:[%s489] sm:$0xf]
        %v1122 = vld [vmem:[%s489 + $0x4] sm:$0xf]
        %v1123 = vld [vmem:[%s489 + $0x8] sm:$0xf]
        %v1124 = vld [vmem:[%s489 + $0xc] sm:$0xf]
        %v1125 = vld [vmem:[%s489 + $0x10] sm:$0xf]
        %v1126 = vld [vmem:[%s489 + $0x14] sm:$0xf]
        %v1127 = vld [vmem:[%s489 + $0x18] sm:$0xf]
        %v1128 = vld [vmem:[%s489 + $0x1c] sm:$0xf]
        %v1129 = vld [vmem:[%s489 + $0x20] sm:$0xf]
        %v1130 = vld [vmem:[%s489 + $0x24] sm:$0xf]
        %v1131 = vld [vmem:[%s489 + $0x28] sm:$0xf]
        %v1132 = vld [vmem:[%s489 + $0x2c] sm:$0xf]
        %v1133 = vld [vmem:[%s489 + $0x30] sm:$0xf]
        %v1134 = vld [vmem:[%s489 + $0x34] sm:$0xf]
        %v1135 = vld [vmem:[%s489 + $0x38] sm:$0xf]
        %v1136 = vld [vmem:[%s489 + $0x3c] sm:$0xf]
        %v1137 = vld [vmem:[%s489 + $0x40] sm:$0xf]
        %v1138 = vld [vmem:[%s489 + $0x44] sm:$0xf]
        %v1139 = vld [vmem:[%s489 + $0x48] sm:$0xf]
        %v1140 = vld [vmem:[%s489 + $0x4c] sm:$0xf]
        %v1141 = vld [vmem:[%s489 + $0x50] sm:$0xf]
        %v1142 = vld [vmem:[%s489 + $0x54] sm:$0xf]
        %v1143 = vld [vmem:[%s489 + $0x58] sm:$0xf]
        %v1144 = vld [vmem:[%s489 + $0x5c] sm:$0xf]
        %v1145 = vld [vmem:[%s489 + $0x60] sm:$0xf]
        %v1146 = vld [vmem:[%s489 + $0x64] sm:$0xf]
        %v1147 = vld [vmem:[%s489 + $0x68] sm:$0xf]
        %v1148 = vld [vmem:[%s489 + $0x6c] sm:$0xf]
        %v1149 = vld [vmem:[%s489 + $0x70] sm:$0xf]
        %v1150 = vld [vmem:[%s489 + $0x74] sm:$0xf]
        %v1151 = vld [vmem:[%s489 + $0x78] sm:$0xf]
        %v1152 = vld [vmem:[%s489 + $0x7c] sm:$0xf]
        %v1153 = vld [vmem:[%s492] sm:$0x1]
        %v1155 = vlaneseq
        %v1156 = vshrl.u32 %v1155, 7
        %v1157 = vsub.s32 0, %v1156
        %v1158 = vrot.slane %v1153, %v1157
        %v1192 = vunpack.c.l.b16 %v1121
        %v1193 = vunpack.c.l.b16 %v1122
        %v1194 = vunpack.c.l.b16 %v1123
        %v1195 = vunpack.c.l.b16 %v1124
        %v1196 = vunpack.c.l.b16 %v1125
        %v1197 = vunpack.c.l.b16 %v1126
        %v1198 = vunpack.c.l.b16 %v1127
        %v1199 = vunpack.c.l.b16 %v1128
        %v1200 = vunpack.c.l.b16 %v1129
        %v1201 = vunpack.c.l.b16 %v1130
        %v1202 = vunpack.c.l.b16 %v1131
        %v1203 = vunpack.c.l.b16 %v1132
        %v1204 = vunpack.c.l.b16 %v1133
        %v1205 = vunpack.c.l.b16 %v1134
        %v1206 = vunpack.c.l.b16 %v1135
        %v1207 = vunpack.c.l.b16 %v1136
        %v1208 = vunpack.c.l.b16 %v1137
        %v1209 = vunpack.c.l.b16 %v1138
        %v1210 = vunpack.c.l.b16 %v1139
        %v1211 = vunpack.c.l.b16 %v1140
        %v1212 = vunpack.c.l.b16 %v1141
        %v1213 = vunpack.c.l.b16 %v1142
        %v1214 = vunpack.c.l.b16 %v1143
        %v1215 = vunpack.c.l.b16 %v1144
        %v1216 = vunpack.c.l.b16 %v1145
        %v1217 = vunpack.c.l.b16 %v1146
        %v1218 = vunpack.c.l.b16 %v1147
        %v1219 = vunpack.c.l.b16 %v1148
        %v1220 = vunpack.c.l.b16 %v1149
        %v1221 = vunpack.c.l.b16 %v1150
        %v1222 = vunpack.c.l.b16 %v1151
        %v1223 = vunpack.c.l.b16 %v1152
        %v1224 = vpack.c.b16 %v1193, %v1192
        %v1225 = vpack.c.b16 %v1195, %v1194
        %v1226 = vpack.c.b16 %v1197, %v1196
        %v1227 = vpack.c.b16 %v1199, %v1198
        %v1228 = vpack.c.b16 %v1201, %v1200
        %v1229 = vpack.c.b16 %v1203, %v1202
        %v1230 = vpack.c.b16 %v1205, %v1204
        %v1231 = vpack.c.b16 %v1207, %v1206
        %v1232 = vpack.c.b16 %v1209, %v1208
        %v1233 = vpack.c.b16 %v1211, %v1210
        %v1234 = vpack.c.b16 %v1213, %v1212
        %v1235 = vpack.c.b16 %v1215, %v1214
        %v1236 = vpack.c.b16 %v1217, %v1216
        %v1237 = vpack.c.b16 %v1219, %v1218
        %v1238 = vpack.c.b16 %v1221, %v1220
        %v1239 = vpack.c.b16 %v1223, %v1222
        %1256 = vmatprep.subr.bf16.mxu0 0
        %1257 = vmatpush1.bf16.msra.mxu0 %v1224
        %1258 = vmatprep.subr.bf16.mxu0 0
        %1259 = vmatpush1.bf16.msra.mxu0 %v1225
        %1260 = vmatprep.subr.bf16.mxu0 0
        %1261 = vmatpush1.bf16.msra.mxu0 %v1226
        %1262 = vmatprep.subr.bf16.mxu0 0
        %1263 = vmatpush1.bf16.msra.mxu0 %v1227
        %1264 = vmatprep.subr.bf16.mxu0 0
        %1265 = vmatpush1.bf16.msra.mxu0 %v1228
        %1266 = vmatprep.subr.bf16.mxu0 0
        %1267 = vmatpush1.bf16.msra.mxu0 %v1229
        %1268 = vmatprep.subr.bf16.mxu0 0
        %1269 = vmatpush1.bf16.msra.mxu0 %v1230
        %1270 = vmatprep.subr.bf16.mxu0 0
        %1271 = vmatpush1.bf16.msra.mxu0 %v1231
        %1272 = vmatprep.subr.bf16.mxu0 0
        %1273 = vmatpush1.bf16.msra.mxu0 %v1232
        %1274 = vmatprep.subr.bf16.mxu0 0
        %1275 = vmatpush1.bf16.msra.mxu0 %v1233
        %1276 = vmatprep.subr.bf16.mxu0 0
        %1277 = vmatpush1.bf16.msra.mxu0 %v1234
        %1278 = vmatprep.subr.bf16.mxu0 0
        %1279 = vmatpush1.bf16.msra.mxu0 %v1235
        %1280 = vmatprep.subr.bf16.mxu0 0
        %1281 = vmatpush1.bf16.msra.mxu0 %v1236
        %1282 = vmatprep.subr.bf16.mxu0 0
        %1283 = vmatpush1.bf16.msra.mxu0 %v1237
        %1284 = vmatprep.subr.bf16.mxu0 0
        %1285 = vmatpush1.bf16.msra.mxu0 %v1238
        %1286 = vmatprep.subr.bf16.mxu0 0
        %1287 = vmatpush1.bf16.msra.mxu0 %v1239
        %1288 = vmatprep.mubr.bf16.mxu0 %v1120
        %1289 = vmatmul.mubr.bf16.gmra.mrb[0].mxu0 %v1119
        %v1290 = vpop.f32.mrb[0].mxu0
        %v1291 = vadd.f32 %v1158, %v1290
        %v1292 = vpop.f32.mrb[0].mxu0
        %v1293 = vpop.f32.mrb[0].mxu0
        %v1294 = vadd.f32 %v1158, %v1293
        %v1295 = vpop.f32.mrb[0].mxu0
        %1296 = vdwg.mxu0
        %1297 = vst [vmem:[%s497] sm:$0xff] %v1291
        %1298 = vst [vmem:[%s497 + $0x8] sm:$0xff] %v1294
        %p1299 = scmp.lt.s32.totalorder %s26, 1
        %s1300 = scalar_select %p1299, %s26, 1
        %s1301 = smul.addr %s1300, 2
        %s1302 = smul.addr %s1301, 8
        %s1303 = scalar_lea.vmem %s9, %s1302
        // Predicated region
        $region65: #{rl_model_forward.1} parent=55 // pred_check
          %p1304 = pneg %p273
        $region66: #{rl_model_forward.1} parent=55 // pred_check_branch
          %1306 = sbr.rel (%p1304) target = $region68
        $region67: #{rl_model_forward.1} parent=55 // pred_region
          _
        $region68: #{rl_model_forward.1} parent=55 // pred_fallthru
          _
      $region56: #{rl_model_forward.1} parent=5 // pred_fallthru
        _
      %p1307 = scmp.le.s32.totalorder 2, %s21
      // Predicated region
      $region69: #{rl_model_forward.1} parent=5 // pred_check
        %p1308 = pneg %p1307
      $region70: #{rl_model_forward.1} parent=5 // pred_check_branch
        %1310 = sbr.rel (%p1308) target = $region72
      $region71: #{rl_model_forward.1} parent=5 // pred_region
        %s1311 = ssub.s32 %s21, 2
        // Predicated region
        $region73: #{rl_model_forward.1} parent=71 // pred_check
          %p1312 = pneg %p279
        $region74: #{rl_model_forward.1} parent=71 // pred_check_branch
          %1314 = sbr.rel (%p1312) target = $region76
        $region75: #{rl_model_forward.1} parent=71 // pred_region
          %p1315 = scmp.lt.s32.totalorder %s27, 1
          %s1316 = scalar_select %p1315, %s27, 1
          %s1317 = smul.addr %s1316, 2
          %s1318 = smul.addr %s1317, 8
          %s1319 = scalar_lea.vmem %s9, %s1318
        $region76: #{rl_model_forward.1} parent=71 // pred_fallthru
          _
      $region72: #{rl_model_forward.1} parent=5 // pred_fallthru
        _
    $region6: #{rl_model_forward.1} parent=1 // loop_footer
      %s25 = sadd.s32 1, %s21
    $region7: #{rl_model_forward.1} parent=1 // loop_footer_branch
      %20 = sbr.rel target = $region3
    $region8: #{rl_model_forward.1} parent=1 // loop_exit
      _
    %1320 = vsyncpa [#allocation3], 1
    %s1321 = scalar_lea.sflag [#allocation3], 1
    %1322 = vsyncpa %s1321, 1
    %1323 = vsyncpa [#allocation5], 1
    %s1324 = scalar_lea.sflag [#allocation5], 1
    %1325 = vsyncpa %s1324, 1

</llo_original>
